<compile_context>
chip_gen: v7x
topology: tpu7x:2x2x1
jax: 0.10.0
libtpu: 0.0.40
codegen_flags: <defaults>
</compile_context>

<pallas_src>
import functools

import jax
import jax.numpy as jnp
from jax import lax
from jax.experimental import pallas as pl
from jax.experimental.pallas import tpu as pltpu


# ----------------------------- kernels ------------------------------------


def _partial_row_sq_sum(diff, i, tile_b, batch_size, mask_rows):
    """Sum of per-row squared norms for this tile, padded rows masked out."""
    row_sq = jnp.sum(diff * diff, axis=1, keepdims=True)             # (TB, 1)
    if mask_rows:
        # Only emitted when B % TB != 0; select keeps padded-row garbage
        # (even NaN/Inf) from leaking into the reduction.
        row_ids = i * tile_b + lax.broadcasted_iota(jnp.int32, (tile_b, 1), 0)
        row_sq = jnp.where(row_ids < batch_size, row_sq, 0.0)
    return jnp.sum(row_sq, axis=0, keepdims=True)                    # (1, 1)


def _afr_fused_kernel(ids_ref, labels_ref, x_ref, wT_ref, anchors_ref, out_ref,
                      *, tile_b, batch_size, mask_rows):
    """Fused anchor gather: one_hot(labels) @ anchor_table on the MXU."""
    i = pl.program_id(0)

    # Projection on the MXU; native-dtype operands, f32 accumulation.
    proj = jnp.dot(x_ref[...], wT_ref[...],
                   preferred_element_type=jnp.float32)               # (TB, P)

    # ids_ref is a pinned (1, C) iota input (hoisted out of the grid body);
    # the compare broadcasts (TB,1) against (1,C) -> (TB,C) one-hot.
    one_hot = (labels_ref[...] == ids_ref[...]).astype(jnp.float32)  # (TB, C)
    anchors = jnp.dot(one_hot, anchors_ref[...],
                      preferred_element_type=jnp.float32)            # (TB, P)

    # Bias is folded into `anchors` (anchor - b), so
    #   proj - anchors == (x @ W.T + b) - class_anchors[labels]
    part = _partial_row_sq_sum(proj - anchors, i, tile_b, batch_size, mask_rows)
    out_ref[...] = jnp.broadcast_to(part, out_ref.shape)             # (8, 128)


def _afr_streamed_kernel(x_ref, wT_ref, anchors_ref, out_ref,
                         *, tile_b, batch_size, mask_rows):
    """Pre-gathered anchors streamed as a (TB, P) block (large num_classes)."""
    i = pl.program_id(0)
    proj = jnp.dot(x_ref[...], wT_ref[...],
                   preferred_element_type=jnp.float32)               # (TB, P)
    diff = proj - anchors_ref[...].astype(jnp.float32)
    part = _partial_row_sq_sum(diff, i, tile_b, batch_size, mask_rows)
    out_ref[...] = jnp.broadcast_to(part, out_ref.shape)             # (8, 128)


# --------------------------- wrapper / tiling ------------------------------


def _round_up(x, m):
    return ((x + m - 1) // m) * m


def _vmem_footprint_bytes(tile_b, F, P, C, x_itemsize, w_itemsize, fused):
    """Approximate VMEM held by the pipeline for a given batch tile."""
    feat = 2 * tile_b * _round_up(F, 128) * x_itemsize        # double-buffered stream
    w = _round_up(F, 8) * _round_up(P, 128) * w_itemsize      # pinned, single buffer
    out = 2 * 8 * 128 * 4                                     # per-tile partial slab
    if fused:
        labels = 2 * _round_up(tile_b, 8) * 128 * 4           # (TB,1) i32, lane-padded
        ids = 8 * _round_up(C, 128) * 4                       # pinned (1,C) iota
        table = _round_up(C, 8) * _round_up(P, 128) * 4       # pinned anchor table
        extra = labels + ids + table
    else:
        extra = 2 * _round_up(tile_b, 8) * _round_up(P, 128) * 4   # streamed anchors
    return feat + w + out + extra


def _pick_tile_b(B, F, P, C, x_itemsize, w_itemsize, fused, budget_bytes):
    """Largest batch tile (multiple of 16) that fits the VMEM budget."""
    cap = max(16, _round_up(B, 16))
    for cand in (1024, 512, 256, 128, 64, 32, 16):
        if cand > cap:
            continue
        if _vmem_footprint_bytes(cand, F, P, C, x_itemsize, w_itemsize,
                                 fused) <= budget_bytes:
            return cand
    return 16


def _pinned_spec(block_shape, index_map):
    """Pinned operand (constant index_map): one VMEM buffer is enough."""
    try:
        return pl.BlockSpec(block_shape, index_map, pipeline_mode=pl.Buffered(1))
    except Exception:  # older jax without pipeline_mode / Buffered
        return pl.BlockSpec(block_shape, index_map)


def afr_loss_pallas(features, labels, wT, b, class_anchors, lambda_value, *,
                    tile_b=None, fuse_gather=None, vmem_budget_bytes=48 << 20):
    """Forward pass of AnchoredFeatureRegularizer (anchor_type='class').

    features:      (B, F)    raw features (f32 or bf16)
    labels:        (B,)      int class labels in [0, C)
    wT:            (F, P)    projection weight, transposed (W.T)
    b:             (P,)      projection bias
    class_anchors: (C, P)    per-class anchors
    """
    B, F = features.shape
    Fw, P = wT.shape
    C = class_anchors.shape[0]
    assert Fw == F
    assert labels.shape == (B,)

    if B == 0:  # module returns 0.0 for an empty batch
        return jnp.zeros((), jnp.float32)

    if fuse_gather is None:
        # For large class counts the one-hot build + (TB,C)x(C,P) matmul and
        # the pinned table stop paying off; stream pre-gathered anchors.
        fuse_gather = C <= 512

    # Keep W^T in the feature dtype so bf16 features hit the MXU natively.
    wT = wT.astype(features.dtype)
    x_itemsize = features.dtype.itemsize
    w_itemsize = wT.dtype.itemsize

    if tile_b is None:
        tile_b = _pick_tile_b(B, F, P, C, x_itemsize, w_itemsize, fuse_gather,
                              vmem_budget_bytes)
    assert tile_b % 16 == 0, "batch tile must be a multiple of 16 (bf16 packing)"

    num_tiles = (B + tile_b - 1) // tile_b
    mask_rows = (B % tile_b) != 0

    # Tiny glue (O(C*P)): fold the linear bias into the anchor table once.
    adj_anchors = class_anchors.astype(jnp.float32) - b.astype(jnp.float32)[None, :]

    footprint = _vmem_footprint_bytes(tile_b, F, P, C, x_itemsize, w_itemsize,
                                      fuse_gather)
    vmem_limit = int(max(footprint + (4 << 20), 32 << 20))

    out_shape = jax.ShapeDtypeStruct((num_tiles * 8, 128), jnp.float32)
    out_spec = pl.BlockSpec((8, 128), lambda i: (i, 0))
    x_spec = pl.BlockSpec((tile_b, F), lambda i: (i, 0))
    wT_spec = _pinned_spec((F, P), lambda i: (0, 0))

    if fuse_gather:
        kernel = functools.partial(_afr_fused_kernel, tile_b=tile_b,
                                   batch_size=B, mask_rows=mask_rows)
        class_ids = jnp.arange(C, dtype=jnp.int32).reshape(1, C)
        labels_2d = labels.astype(jnp.int32).reshape(B, 1)
        in_specs = [
            _pinned_spec((1, C), lambda i: (0, 0)),      # class-id iota (pinned)
            pl.BlockSpec((tile_b, 1), lambda i: (i, 0)), # labels tile
            x_spec,                                      # features tile (stream)
            wT_spec,                                     # W^T (pinned)
            _pinned_spec((C, P), lambda i: (0, 0)),      # anchor table (pinned)
        ]
        args = (class_ids, labels_2d, features, wT, adj_anchors)
        flops = 2 * B * F * P + 2 * B * C * P + 4 * B * P
        bytes_accessed = (B * F * x_itemsize + B * 4 + F * P * w_itemsize
                          + C * P * 4 + C * 4 + num_tiles * 8 * 128 * 4)
    else:
        kernel = functools.partial(_afr_streamed_kernel, tile_b=tile_b,
                                   batch_size=B, mask_rows=mask_rows)
        anchors_per_row = adj_anchors[labels]            # (B, P) gather in XLA
        in_specs = [
            x_spec,                                      # features tile (stream)
            wT_spec,                                     # W^T (pinned)
            pl.BlockSpec((tile_b, P), lambda i: (i, 0)), # per-sample anchors
        ]
        args = (features, wT, anchors_per_row)
        flops = 2 * B * F * P + 4 * B * P
        bytes_accessed = (B * F * x_itemsize + F * P * w_itemsize
                          + B * P * 4 + num_tiles * 8 * 128 * 4)

    partials = pl.pallas_call(
        kernel,
        out_shape=out_shape,
        grid_spec=pltpu.PrefetchScalarGridSpec(
            num_scalar_prefetch=0,
            grid=(num_tiles,),
            in_specs=in_specs,
            out_specs=out_spec,
        ),
        compiler_params=pltpu.CompilerParams(
            # Independent per-tile partials -> shardable across both TCs (v7x).
            dimension_semantics=("parallel",),
            vmem_limit_bytes=vmem_limit,
        ),
        cost_estimate=pl.CostEstimate(flops=int(flops), transcendentals=0,
                                      bytes_accessed=int(bytes_accessed)),
    )(*args)

    # Final reduction + lambda/B scaling in JAX: num_tiles scalars, and
    # changing lambda_value (e.g. a schedule) never recompiles the kernel.
    tile_sums = partials.reshape(num_tiles, 8, 128)[:, 0, 0]
    return (float(lambda_value) / float(B)) * jnp.sum(tile_sums)


def afr_loss_ref(features, labels, wT, b, class_anchors, lambda_value):
    """Pure-JAX reference mirroring the PyTorch forward."""
    proj = features.astype(jnp.float32) @ wT.astype(jnp.float32) + b
    anchors = class_anchors[labels]
    dist_sq = jnp.sum((proj - anchors) ** 2, axis=1)
    return lambda_value * jnp.mean(dist_sq)


if __name__ == "__main__":
    # Small shapes consistent with the module's forward.  B is deliberately
    # NOT a multiple of the batch tile so the padded-tile masking path runs.
    batch = 20
    num_classes = 4
    feature_dim = 32
    projection_dim = 16
    lambda_value = 0.001

    key = jax.random.PRNGKey(0)
    k_x, k_w, k_b, k_a, k_l = jax.random.split(key, 5)

    features = jax.random.normal(k_x, (batch, feature_dim), dtype=jnp.float32)
    labels = jax.random.randint(k_l, (batch,), 0, num_classes, dtype=jnp.int32)

    # Deterministic parameter init (nn.Linear-like uniform bound), synthetic.
    bound = 1.0 / (feature_dim ** 0.5)
    W = jax.random.uniform(k_w, (projection_dim, feature_dim),
                           minval=-bound, maxval=bound, dtype=jnp.float32)
    b = jax.random.uniform(k_b, (projection_dim,),
                           minval=-bound, maxval=bound, dtype=jnp.float32)
    wT = W.T  # (feature_dim, projection_dim)

    # class_anchors buffer: zeros at __init__; random values emulate a
    # post-EMA state (forward semantics are independent of anchor values).
    class_anchors = jax.random.normal(
        k_a, (num_classes, projection_dim), dtype=jnp.float32)

    ref = afr_loss_ref(features, labels, wT, b, class_anchors, lambda_value)

    # 1) Fused one-hot gather, explicit small tile -> grid (2,), last tile has
    #    4 valid rows (exercises the padded-row mask).
    loss_fused = afr_loss_pallas(features, labels, wT, b, class_anchors,
                                 lambda_value, tile_b=16)
    loss_fused = jax.block_until_ready(loss_fused)
    assert jnp.allclose(loss_fused, ref, rtol=1e-5, atol=1e-6), (loss_fused, ref)

    # 2) Pre-gathered anchor stream (large-num_classes path), auto tile size.
    loss_stream = afr_loss_pallas(features, labels, wT, b, class_anchors,
                                  lambda_value, fuse_gather=False)
    loss_stream = jax.block_until_ready(loss_stream)
    assert jnp.allclose(loss_stream, ref, rtol=1e-5, atol=1e-6), (loss_stream, ref)

    # 3) bf16 feature/weight stream (halves HBM traffic on the dominant stream).
    loss_bf16 = afr_loss_pallas(features.astype(jnp.bfloat16), labels,
                                wT.astype(jnp.bfloat16), b, class_anchors,
                                lambda_value)
    loss_bf16 = jax.block_until_ready(loss_bf16)
    assert jnp.allclose(loss_bf16, ref, rtol=5e-2, atol=1e-3), (loss_bf16, ref)

    print("KERNEL_OK")
</pallas_src>

<mosaic_0001>
module attributes {stable_mosaic.version = 11 : i64} {
  func.func @_afr_fused_kernel(%arg0: i32, %arg1: memref<1x4xi32, #tpu.memory_space<vmem>>, %arg2: memref<16x1xi32, #tpu.memory_space<vmem>>, %arg3: memref<16x32xf32, #tpu.memory_space<vmem>>, %arg4: memref<32x16xf32, #tpu.memory_space<vmem>>, %arg5: memref<4x16xf32, #tpu.memory_space<vmem>>, %arg6: memref<8x128xf32, #tpu.memory_space<vmem>>) attributes {dimension_semantics = [#tpu.dimension_semantics<parallel>], iteration_bounds = array<i64: 2>, scalar_prefetch = 0 : i64, scratch_operands = 0 : i64, tpu.core_type = #tpu.core_type<tc>, window_params = [{pipeline_mode = #tpu.pipeline_mode<synchronous>, transform_indices = @transform_0, window_bounds = array<i64: 1, 4>}, {transform_indices = @transform_1, window_bounds = array<i64: 16, 1>}, {transform_indices = @transform_2, window_bounds = array<i64: 16, 32>}, {pipeline_mode = #tpu.pipeline_mode<synchronous>, transform_indices = @transform_3, window_bounds = array<i64: 32, 16>}, {pipeline_mode = #tpu.pipeline_mode<synchronous>, transform_indices = @transform_4, window_bounds = array<i64: 4, 16>}, {transform_indices = @transform_5, window_bounds = array<i64: 8, 128>}]} {
    %c0 = arith.constant 0 : index
    %c0_0 = arith.constant 0 : index
    %0 = vector.load %arg3[%c0, %c0_0] : memref<16x32xf32, #tpu.memory_space<vmem>>, vector<16x32xf32>
    %c0_1 = arith.constant 0 : index
    %c0_2 = arith.constant 0 : index
    %1 = vector.load %arg4[%c0_1, %c0_2] : memref<32x16xf32, #tpu.memory_space<vmem>>, vector<32x16xf32>
    %cst = arith.constant dense<0.000000e+00> : vector<16x16xf32>
    %2 = tpu.matmul %0, %1, %cst {dimension_numbers = #tpu.dot_dimension_numbers<[1], [0], [0], [1], [0, 0, 1, 1], [], []>} : vector<16x32xf32>, vector<32x16xf32>, vector<16x16xf32> -> vector<16x16xf32>
    %c0_3 = arith.constant 0 : index
    %c0_4 = arith.constant 0 : index
    %3 = vector.load %arg2[%c0_3, %c0_4] : memref<16x1xi32, #tpu.memory_space<vmem>>, vector<16x1xi32>
    %c0_5 = arith.constant 0 : index
    %c0_6 = arith.constant 0 : index
    %4 = vector.load %arg1[%c0_5, %c0_6] : memref<1x4xi32, #tpu.memory_space<vmem>>, vector<1x4xi32>
    %5 = vector.broadcast %3 : vector<16x1xi32> to vector<16x4xi32>
    %6 = vector.broadcast %4 : vector<1x4xi32> to vector<16x4xi32>
    %7 = arith.cmpi eq, %5, %6 : vector<16x4xi32>
    %8 = arith.extui %7 : vector<16x4xi1> to vector<16x4xi32>
    %9 = arith.sitofp %8 : vector<16x4xi32> to vector<16x4xf32>
    %c0_7 = arith.constant 0 : index
    %c0_8 = arith.constant 0 : index
    %10 = vector.load %arg5[%c0_7, %c0_8] : memref<4x16xf32, #tpu.memory_space<vmem>>, vector<4x16xf32>
    %cst_9 = arith.constant dense<0.000000e+00> : vector<16x16xf32>
    %11 = tpu.matmul %9, %10, %cst_9 {dimension_numbers = #tpu.dot_dimension_numbers<[1], [0], [0], [1], [0, 0, 1, 1], [], []>} : vector<16x4xf32>, vector<4x16xf32>, vector<16x16xf32> -> vector<16x16xf32>
    %12 = arith.subf %2, %11 : vector<16x16xf32>
    %13 = arith.mulf %12, %12 : vector<16x16xf32>
    %cst_10 = arith.constant dense<0.000000e+00> : vector<16xf32>
    %14 = vector.multi_reduction <add>, %13, %cst_10 [1] : vector<16x16xf32> to vector<16xf32>
    %15 = vector.shape_cast %14 : vector<16xf32> to vector<16x1xf32>
    %c16_i32 = arith.constant 16 : i32
    %16 = arith.muli %arg0, %c16_i32 : i32
    %17 = tpu.iota {dimensions = array<i32: 0>} : vector<16x1xi32>
    %18 = vector.broadcast %16 : i32 to vector<16x1xi32>
    %19 = arith.addi %18, %17 : vector<16x1xi32>
    %c20_i32 = arith.constant 20 : i32
    %20 = vector.broadcast %c20_i32 : i32 to vector<16x1xi32>
    %21 = arith.cmpi slt, %19, %20 : vector<16x1xi32>
    %cst_11 = arith.constant 0.000000e+00 : f32
    %22 = vector.broadcast %cst_11 : f32 to vector<16x1xf32>
    %23 = arith.select %21, %15, %22 : vector<16x1xi1>, vector<16x1xf32>
    %cst_12 = arith.constant dense<0.000000e+00> : vector<1xf32>
    %24 = vector.multi_reduction <add>, %23, %cst_12 [0] : vector<16x1xf32> to vector<1xf32>
    %25 = vector.shape_cast %24 : vector<1xf32> to vector<1x1xf32>
    %26 = vector.shape_cast %25 : vector<1x1xf32> to vector<1x1xf32>
    %27 = vector.broadcast %26 : vector<1x1xf32> to vector<8x128xf32>
    %c0_13 = arith.constant 0 : index
    %c0_14 = arith.constant 0 : index
    %28 = vector.load %arg6[%c0_13, %c0_14] : memref<8x128xf32, #tpu.memory_space<vmem>>, vector<8x128xf32>
    tpu.vector_store %arg6[%c0_13, %c0_14], %27 {strides = array<i32>} : memref<8x128xf32, #tpu.memory_space<vmem>>, vector<8x128xf32>,
    return
  }
  func.func @transform_0(%arg0: i32) -> (i32, i32) {
    %c0_i32 = arith.constant 0 : i32
    %c0_i32_0 = arith.constant 0 : i32
    %c0_i32_1 = arith.constant 0 : i32
    return %c0_i32, %c0_i32_0 : i32, i32
  }
  func.func @transform_1(%arg0: i32) -> (i32, i32) {
    %c0_i32 = arith.constant 0 : i32
    %c0_i32_0 = arith.constant 0 : i32
    return %arg0, %c0_i32 : i32, i32
  }
  func.func @transform_2(%arg0: i32) -> (i32, i32) {
    %c0_i32 = arith.constant 0 : i32
    %c0_i32_0 = arith.constant 0 : i32
    return %arg0, %c0_i32 : i32, i32
  }
  func.func @transform_3(%arg0: i32) -> (i32, i32) {
    %c0_i32 = arith.constant 0 : i32
    %c0_i32_0 = arith.constant 0 : i32
    %c0_i32_1 = arith.constant 0 : i32
    return %c0_i32, %c0_i32_0 : i32, i32
  }
  func.func @transform_4(%arg0: i32) -> (i32, i32) {
    %c0_i32 = arith.constant 0 : i32
    %c0_i32_0 = arith.constant 0 : i32
    %c0_i32_1 = arith.constant 0 : i32
    return %c0_i32, %c0_i32_0 : i32, i32
  }
  func.func @transform_5(%arg0: i32) -> (i32, i32) {
    %c0_i32 = arith.constant 0 : i32
    %c0_i32_0 = arith.constant 0 : i32
    return %arg0, %c0_i32 : i32, i32
  }
}

</mosaic_0001>

<llo_original>
// kernel: tpu_custom_call.1
$region0: #{tpu_custom_call.1}
  #allocation0 [shape = 'u32[]', space=smem, size = 0x4, offset = 0x4, fixed_abs, tag = 'smem constant byte address 0x4 - core index']
  #allocation1 [shape = 'u32[144,128]{1,0:T(1,128)}', space=vmem, size = 0x12000, scoped, tag = 'internal scratch']
  %s0 = inlined_call_operand.vmem [shape: s32[1,4], index: 0, kind: input, shape index: {}]
  %s1 = inlined_call_operand.vmem [shape: s32[20,1], index: 1, kind: input, shape index: {}]
  %s2 = inlined_call_operand.vmem [shape: f32[20,32], index: 2, kind: input, shape index: {}]
  %s3 = inlined_call_operand.vmem [shape: f32[32,16], index: 3, kind: input, shape index: {}]
  %s4 = inlined_call_operand.vmem [shape: f32[4,16], index: 4, kind: input, shape index: {}]
  %s5 = inlined_call_operand.hbm [shape: f32[16,128], index: 5, kind: output, shape index: {}]
  %s6 = sld [smem:[#allocation0]]
  $region53: #{tpu_custom_call.1} parent=0
    _
  %s8 = ssub.s32 1, %s6
  %s9 = scalar_select 0, %s8, %s6
  $region1: #{tpu_custom_call.1} parent=0
    #allocation2 [shape = 'u8[8192]{0}', space=vmem, size = 0x2000, scoped, tag = 'output window, operand 0']
    #allocation3 [shape = 's32[2]{0}', space=sflag, size = 0x8, scoped, tag = 'scoped memory for tpu_custom_call.1']
    %10 = vsyncpa [#allocation3], 0
    %s11 = scalar_lea.sflag [#allocation3], 1
    %12 = vsyncpa %s11, 0
    loop: start=0, step=1, limit=4
    $region2: #{tpu_custom_call.1} parent=1 // loop_pre_header
      _
    $region3: #{tpu_custom_call.1} parent=1 // loop_header
      %s14 = sphi 0, %s18
      %p15 = scmp.ge.s32.totalorder %s14, 4
      %s22 = sphi 0, %s22
      %s24 = sphi 0, %s22
      %s25 = sphi 0, %s24
      %s39 = sphi 0, %s25
      %s45 = sphi 0, %s47
      %s48 = sphi 0, %s45
      %s49 = sphi 0, %s48
      %s65 = sphi 0, %s49
      %s71 = sphi 0, %s73
      %s74 = sphi 0, %s71
      %s75 = sphi 0, %s74
      %s91 = sphi 0, %s75
      %s95 = sphi 0, %s95
      %s97 = sphi 0, %s95
      %s98 = sphi 0, %s97
      %s112 = sphi 0, %s98
      %s116 = sphi 0, %s116
      %s118 = sphi 0, %s116
      %s119 = sphi 0, %s118
      %s133 = sphi 0, %s119
      %s139 = sphi 0, %s141
      %s142 = sphi 0, %s139
      %s143 = sphi 0, %s142
      %s159 = sphi 0, %s143
    $region4: #{tpu_custom_call.1} parent=1 // loop_header_branch
      %17 = sbr.rel (%p15) target = $region8
    $region5: #{tpu_custom_call.1} parent=1 // loop_body
      %s19 = ssub.s32 %s14, 1
      %s20 = ssub.s32 %s14, 2
      %s21 = sadd.s32 %s14, 1
      %s23 = sadd.s32 %s22, 1
      %p26 = scmp.eq.s32.totalorder %s14, 1
      %p27 = scmp.ne.s32.totalorder %s22, %s24
      %p28 = scmp.eq.s32.totalorder %s14, 0
      %p29 = por %p27, %p28
      %p30 = scmp.ne.s32.totalorder %s22, %s24
      %p31 = scmp.eq.s32.totalorder %s19, 1
      %p32 = por %p30, %p31
      %p33 = scmp.ne.s32.totalorder %s24, %s25
      %p34 = scmp.eq.s32.totalorder %s19, 0
      %p35 = por %p33, %p34
      %p36 = scmp.ne.s32.totalorder %s24, %s25
      %p37 = scmp.eq.s32.totalorder %s20, 1
      %p38 = por %p36, %p37
      %p40 = scmp.ne.s32.totalorder %s25, %s39
      %p41 = scmp.eq.s32.totalorder %s20, 0
      %p42 = por %p40, %p41
      %s43 = ssub.s32 %s14, %s21
      %p44 = scmp.eq.s32.totalorder %s43, 0
      %s46 = sadd.s32 %s45, 1
      %s47 = scalar_select %p44, %s45, %s46
      %p50 = pneg %p44
      %p51 = scmp.eq.s32.totalorder %s14, 1
      %p52 = por %p50, %p51
      %p53 = scmp.ne.s32.totalorder %s45, %s48
      %p54 = scmp.eq.s32.totalorder %s14, 0
      %p55 = por %p53, %p54
      %p56 = scmp.ne.s32.totalorder %s45, %s48
      %p57 = scmp.eq.s32.totalorder %s19, 1
      %p58 = por %p56, %p57
      %p59 = scmp.ne.s32.totalorder %s48, %s49
      %p60 = scmp.eq.s32.totalorder %s19, 0
      %p61 = por %p59, %p60
      %p62 = scmp.ne.s32.totalorder %s48, %s49
      %p63 = scmp.eq.s32.totalorder %s20, 1
      %p64 = por %p62, %p63
      %p66 = scmp.ne.s32.totalorder %s49, %s65
      %p67 = scmp.eq.s32.totalorder %s20, 0
      %p68 = por %p66, %p67
      %s69 = ssub.s32 %s14, %s21
      %p70 = scmp.eq.s32.totalorder %s69, 0
      %s72 = sadd.s32 %s71, 1
      %s73 = scalar_select %p70, %s71, %s72
      %p76 = pneg %p70
      %p77 = scmp.eq.s32.totalorder %s14, 1
      %p78 = por %p76, %p77
      %p79 = scmp.ne.s32.totalorder %s71, %s74
      %p80 = scmp.eq.s32.totalorder %s14, 0
      %p81 = por %p79, %p80
      %p82 = scmp.ne.s32.totalorder %s71, %s74
      %p83 = scmp.eq.s32.totalorder %s19, 1
      %p84 = por %p82, %p83
      %p85 = scmp.ne.s32.totalorder %s74, %s75
      %p86 = scmp.eq.s32.totalorder %s19, 0
      %p87 = por %p85, %p86
      %p88 = scmp.ne.s32.totalorder %s74, %s75
      %p89 = scmp.eq.s32.totalorder %s20, 1
      %p90 = por %p88, %p89
      %p92 = scmp.ne.s32.totalorder %s75, %s91
      %p93 = scmp.eq.s32.totalorder %s20, 0
      %p94 = por %p92, %p93
      %s96 = sadd.s32 %s95, 1
      %p99 = scmp.eq.s32.totalorder %s14, 1
      %p100 = scmp.ne.s32.totalorder %s95, %s97
      %p101 = scmp.eq.s32.totalorder %s14, 0
      %p102 = por %p100, %p101
      %p103 = scmp.ne.s32.totalorder %s95, %s97
      %p104 = scmp.eq.s32.totalorder %s19, 1
      %p105 = por %p103, %p104
      %p106 = scmp.ne.s32.totalorder %s97, %s98
      %p107 = scmp.eq.s32.totalorder %s19, 0
      %p108 = por %p106, %p107
      %p109 = scmp.ne.s32.totalorder %s97, %s98
      %p110 = scmp.eq.s32.totalorder %s20, 1
      %p111 = por %p109, %p110
      %p113 = scmp.ne.s32.totalorder %s98, %s112
      %p114 = scmp.eq.s32.totalorder %s20, 0
      %p115 = por %p113, %p114
      %s117 = sadd.s32 %s116, 1
      %p120 = scmp.eq.s32.totalorder %s14, 1
      %p121 = scmp.ne.s32.totalorder %s116, %s118
      %p122 = scmp.eq.s32.totalorder %s14, 0
      %p123 = por %p121, %p122
      %p124 = scmp.ne.s32.totalorder %s116, %s118
      %p125 = scmp.eq.s32.totalorder %s19, 1
      %p126 = por %p124, %p125
      %p127 = scmp.ne.s32.totalorder %s118, %s119
      %p128 = scmp.eq.s32.totalorder %s19, 0
      %p129 = por %p127, %p128
      %p130 = scmp.ne.s32.totalorder %s118, %s119
      %p131 = scmp.eq.s32.totalorder %s20, 1
      %p132 = por %p130, %p131
      %p134 = scmp.ne.s32.totalorder %s119, %s133
      %p135 = scmp.eq.s32.totalorder %s20, 0
      %p136 = por %p134, %p135
      %s137 = ssub.s32 %s14, %s21
      %p138 = scmp.eq.s32.totalorder %s137, 0
      %s140 = sadd.s32 %s139, 1
      %s141 = scalar_select %p138, %s139, %s140
      %p144 = pneg %p138
      %p145 = scmp.eq.s32.totalorder %s14, 1
      %p146 = por %p144, %p145
      %p147 = scmp.ne.s32.totalorder %s139, %s142
      %p148 = scmp.eq.s32.totalorder %s14, 0
      %p149 = por %p147, %p148
      %p150 = scmp.ne.s32.totalorder %s139, %s142
      %p151 = scmp.eq.s32.totalorder %s19, 1
      %p152 = por %p150, %p151
      %p153 = scmp.ne.s32.totalorder %s142, %s143
      %p154 = scmp.eq.s32.totalorder %s19, 0
      %p155 = por %p153, %p154
      %p156 = scmp.ne.s32.totalorder %s142, %s143
      %p157 = scmp.eq.s32.totalorder %s20, 1
      %p158 = por %p156, %p157
      %p160 = scmp.ne.s32.totalorder %s143, %s159
      %p161 = scmp.eq.s32.totalorder %s20, 0
      %p162 = por %p160, %p161
      %p163 = scmp.le.s32.totalorder 1, %s14
      %p164 = scmp.lt.s32.totalorder %s14, 3
      %p165 = pnand %p163, %p164
      %p166 = pneg %p165
      // Predicated region
      $region9: #{tpu_custom_call.1} parent=5 // pred_check
        _
      $region10: #{tpu_custom_call.1} parent=5 // pred_check_branch
        %168 = sbr.rel (%p165) target = $region12
      $region11: #{tpu_custom_call.1} parent=5 // pred_region
        %s169 = ssub.s32 %s14, 1
        // Predicated region
        $region13: #{tpu_custom_call.1} parent=11 // pred_check
          %p170 = pneg %p35
        $region14: #{tpu_custom_call.1} parent=11 // pred_check_branch
          %172 = sbr.rel (%p170) target = $region16
        $region15: #{tpu_custom_call.1} parent=11 // pred_region
          _
        $region16: #{tpu_custom_call.1} parent=11 // pred_fallthru
          _
        // Predicated region
        $region17: #{tpu_custom_call.1} parent=11 // pred_check
          %p173 = pneg %p108
        $region18: #{tpu_custom_call.1} parent=11 // pred_check_branch
          %175 = sbr.rel (%p173) target = $region20
        $region19: #{tpu_custom_call.1} parent=11 // pred_region
          _
        $region20: #{tpu_custom_call.1} parent=11 // pred_fallthru
          _
        // Predicated region
        $region21: #{tpu_custom_call.1} parent=11 // pred_check
          %p176 = pneg %p129
        $region22: #{tpu_custom_call.1} parent=11 // pred_check_branch
          %178 = sbr.rel (%p176) target = $region24
        $region23: #{tpu_custom_call.1} parent=11 // pred_region
          _
        $region24: #{tpu_custom_call.1} parent=11 // pred_fallthru
          _
      $region12: #{tpu_custom_call.1} parent=5 // pred_fallthru
        _
      %p179 = scmp.lt.s32.totalorder %s14, 2
      // Predicated region
      $region25: #{tpu_custom_call.1} parent=5 // pred_check
        %p180 = pneg %p179
      $region26: #{tpu_custom_call.1} parent=5 // pred_check_branch
        %182 = sbr.rel (%p180) target = $region28
      $region27: #{tpu_custom_call.1} parent=5 // pred_region
        // Predicated region
        $region29: #{tpu_custom_call.1} parent=27 // pred_check
          %p183 = pneg %p55
        $region30: #{tpu_custom_call.1} parent=27 // pred_check_branch
          %185 = sbr.rel (%p183) target = $region32
        $region31: #{tpu_custom_call.1} parent=27 // pred_region
          %s186 = smul.u32 2, %s14
          %s187 = ssub.s32 3, %s186
          %p188 = scmp.lt.s32.totalorder %s187, 2
          %s189 = scalar_select %p188, %s187, 2
          %s190 = smul.u32 128, %s189
          %p191 = scmp.lt.s32.totalorder %s186, 2
          %s192 = scalar_select %p191, %s186, 2
          %s193 = smul.addr %s192, 8
          %s194 = scalar_lea.vmem %s1, %s193
          %s195 = smul.u32 2, %s14
          %s196 = ssub.s32 3, %s195
          %p197 = scmp.lt.s32.totalorder %s196, 2
          %s198 = scalar_select %p197, %s196, 2
          %s199 = smul.u32 128, %s198
        $region32: #{tpu_custom_call.1} parent=27 // pred_fallthru
          _
        // Predicated region
        $region33: #{tpu_custom_call.1} parent=27 // pred_check
          %p200 = pneg %p81
        $region34: #{tpu_custom_call.1} parent=27 // pred_check_branch
          %202 = sbr.rel (%p200) target = $region36
        $region35: #{tpu_custom_call.1} parent=27 // pred_region
          %s203 = smul.u32 2, %s14
          %s204 = ssub.s32 3, %s203
          %p205 = scmp.lt.s32.totalorder %s204, 2
          %s206 = scalar_select %p205, %s204, 2
          %s207 = smul.u32 128, %s206
          %p208 = scmp.lt.s32.totalorder %s203, 2
          %s209 = scalar_select %p208, %s203, 2
          %s210 = smul.addr %s209, 8
          %s211 = scalar_lea.vmem %s2, %s210
          %s212 = smul.u32 2, %s14
          %s213 = ssub.s32 3, %s212
          %p214 = scmp.lt.s32.totalorder %s213, 2
          %s215 = scalar_select %p214, %s213, 2
          %s216 = smul.u32 128, %s215
        $region36: #{tpu_custom_call.1} parent=27 // pred_fallthru
          _
      $region28: #{tpu_custom_call.1} parent=5 // pred_fallthru
        _
      %p217 = scmp.le.s32.totalorder 1, %s14
      %p218 = scmp.lt.s32.totalorder %s14, 3
      %p219 = pnand %p217, %p218
      %p220 = pneg %p219
      // Predicated region
      $region37: #{tpu_custom_call.1} parent=5 // pred_check
        _
      $region38: #{tpu_custom_call.1} parent=5 // pred_check_branch
        %222 = sbr.rel (%p219) target = $region40
      $region39: #{tpu_custom_call.1} parent=5 // pred_region
        %s223 = ssub.s32 %s14, 1
        %p224 = pneg %p35
        %p225 = pneg %p32
        %s226 = smul.u32 2, %s19
        %s227 = ssub.s32 3, %s226
        %p228 = scmp.lt.s32.totalorder %s227, 2
        %s229 = scalar_select %p228, %s227, 2
        %s230 = smul.u32 128, %s229
        %p231 = scmp.lt.s32.totalorder %s226, 2
        %s232 = scalar_select %p231, %s226, 2
        %s233 = smul.addr %s232, 8
        %s234 = scalar_lea.vmem %s1, %s233
        %p235 = pneg %p61
        %p236 = pneg %p58
        %s237 = smul.u32 2, %s19
        %s238 = ssub.s32 3, %s237
        %p239 = scmp.lt.s32.totalorder %s238, 2
        %s240 = scalar_select %p239, %s238, 2
        %s241 = smul.u32 128, %s240
        %p242 = scmp.lt.s32.totalorder %s237, 2
        %s243 = scalar_select %p242, %s237, 2
        %s244 = smul.addr %s243, 8
        %s245 = scalar_lea.vmem %s2, %s244
        %p246 = pneg %p87
        %p247 = pneg %p84
        %p248 = pneg %p108
        %p249 = pneg %p105
        %p250 = pneg %p129
        %p251 = pneg %p126
        %p252 = pneg %p155
        %p253 = pneg %p152
        %s254 = sand.u32 %s142, 1
        %s255 = scalar_lea.sflag [#allocation3], %s254
        %s256 = sand.u32 %s142, 1
        %s257 = smul.addr %s256, 8
        %s258 = scalar_lea.vmem [#allocation2], %s257
        %s259 = smul.u32 2, %s19
        %s260 = ssub.s32 3, %s259
        %p261 = scmp.lt.s32.totalorder %s260, 2
        %s262 = scalar_select %p261, %s260, 2
        %s263 = smul.u32 128, %s262
        %p264 = scmp.lt.s32.totalorder %s259, 2
        %s265 = scalar_select %p264, %s259, 2
        %s266 = smul.addr %s265, 8
        %s267 = scalar_lea.vmem %s1, %s266
        %s268 = smul.u32 2, %s19
        %s269 = ssub.s32 3, %s268
        %p270 = scmp.lt.s32.totalorder %s269, 2
        %s271 = scalar_select %p270, %s269, 2
        %s272 = smul.u32 128, %s271
        %s273 = smul.u32 2, %s19
        %s274 = ssub.s32 3, %s273
        %p275 = scmp.lt.s32.totalorder %s274, 2
        %s276 = scalar_select %p275, %s274, 2
        %s277 = smul.u32 128, %s276
        %p278 = scmp.lt.s32.totalorder %s273, 2
        %s279 = scalar_select %p278, %s273, 2
        %s280 = smul.addr %s279, 8
        %s281 = scalar_lea.vmem %s2, %s280
        %s282 = smul.u32 2, %s19
        %s283 = ssub.s32 3, %s282
        %p284 = scmp.lt.s32.totalorder %s283, 2
        %s285 = scalar_select %p284, %s283, 2
        %s286 = smul.u32 128, %s285
        %v287 = vld [vmem:[%s281] sm:$0xff]
        %v288 = vld [vmem:[%s281 + $0x8] sm:$0xff]
        %v289 = vld [vmem:[%s3] sm:$0xff]
        %v290 = vld [vmem:[%s3 + $0x8] sm:$0xff]
        %v291 = vld [vmem:[%s3 + $0x10] sm:$0xff]
        %v292 = vld [vmem:[%s3 + $0x18] sm:$0xff]
        %vm293 = vcmask 261120
        %v295 = vsel %vm293, %v287, 0
        %v298 = vsel %vm293, %v288, 0
        %300 = vmatprep.subr.mxu0 0.0
        %301 = vmatpush1.msra.mxu0 %v289
        %302 = vmatprep.subr.mxu0 0.0
        %303 = vmatpush1.msra.mxu0 %v290
        %304 = vmatprep.subr.mxu0 0.0
        %305 = vmatpush1.msra.mxu0 %v291
        %306 = vmatprep.subr.mxu0 0.0
        %307 = vmatpush1.msra.mxu0 %v292
        %308 = vmatprep.subr.mxu0 0.0
        %309 = vmatpush1.msra.mxu0 0.0
        %310 = vmatprep.subr.mxu0 0.0
        %311 = vmatpush1.msra.mxu0 0.0
        %312 = vmatprep.subr.mxu0 0.0
        %313 = vmatpush1.msra.mxu0 0.0
        %314 = vmatprep.subr.mxu0 0.0
        %315 = vmatpush1.msra.mxu0 0.0
        %316 = vmatprep.subr.mxu0 0.0
        %317 = vmatpush1.msra.mxu0 0.0
        %318 = vmatprep.subr.mxu0 0.0
        %319 = vmatpush1.msra.mxu0 0.0
        %320 = vmatprep.subr.mxu0 0.0
        %321 = vmatpush1.msra.mxu0 0.0
        %322 = vmatprep.subr.mxu0 0.0
        %323 = vmatpush1.msra.mxu0 0.0
        %324 = vmatprep.subr.mxu0 0.0
        %325 = vmatpush1.msra.mxu0 0.0
        %326 = vmatprep.subr.mxu0 0.0
        %327 = vmatpush1.msra.mxu0 0.0
        %328 = vmatprep.subr.mxu0 0.0
        %329 = vmatpush1.msra.mxu0 0.0
        %330 = vmatprep.subr.mxu0 0.0
        %331 = vmatpush1.msra.mxu0 0.0
        %332 = vmatprep.subr.mxu0 0.0
        %333 = vmatpush1.msra.mxu0 0.0
        %334 = vmatprep.subr.mxu0 0.0
        %335 = vmatpush1.msra.mxu0 0.0
        %336 = vmatprep.subr.mxu0 0.0
        %337 = vmatpush1.msra.mxu0 0.0
        %338 = vmatprep.subr.mxu0 0.0
        %339 = vmatpush1.msra.mxu0 0.0
        %340 = vmatprep.subr.mxu0 0.0
        %341 = vmatpush1.msra.mxu0 0.0
        %342 = vmatprep.subr.mxu0 0.0
        %343 = vmatpush1.msra.mxu0 0.0
        %344 = vmatprep.subr.mxu0 0.0
        %345 = vmatpush1.msra.mxu0 0.0
        %346 = vmatprep.subr.mxu0 0.0
        %347 = vmatpush1.msra.mxu0 0.0
        %348 = vmatprep.subr.mxu0 0.0
        %349 = vmatpush1.msra.mxu0 0.0
        %350 = vmatprep.subr.mxu0 0.0
        %351 = vmatpush1.msra.mxu0 0.0
        %352 = vmatprep.subr.mxu0 0.0
        %353 = vmatpush1.msra.mxu0 0.0
        %354 = vmatprep.subr.mxu0 0.0
        %355 = vmatpush1.msra.mxu0 0.0
        %356 = vmatprep.subr.mxu0 0.0
        %357 = vmatpush1.msra.mxu0 0.0
        %358 = vmatprep.subr.mxu0 0.0
        %359 = vmatpush1.msra.mxu0 0.0
        %360 = vmatprep.subr.mxu0 0.0
        %361 = vmatpush1.msra.mxu0 0.0
        %362 = vmatprep.subr.mxu0 0.0
        %363 = vmatpush1.msra.mxu0 0.0
        %364 = vmatprep.mubr.f32.mxu0 0.0
        %365 = vmatmul.mubr.f32.gmra.mrb[0].mxu0 %v295
        %v366 = vpop.f32.mrb[0].mxu0
        %v367 = vadd.f32 0.0, %v366
        %v368 = vpop.f32.mrb[0].mxu0
        %369 = vmatprep.mubr.f32.mxu0 0.0
        %370 = vmatmul.mubr.f32.gmra.mrb[0].mxu0 %v298
        %v371 = vpop.f32.mrb[0].mxu0
        %v372 = vadd.f32 0.0, %v371
        %v373 = vpop.f32.mrb[0].mxu0
        %374 = vdwg.mxu0
        %v375 = vld [vmem:[%s267] sm:$0xff]
        %v376 = vld [vmem:[%s267 + $0x8] sm:$0xff]
        %v377 = vld [vmem:[%s0] sm:$0x1]
        %378 = vset.pattern.permute.xlu0 0
        %379 = vperm.xlu0 %378, %v375
        %v380 = vpop.permute.xlu0 %379
        %381 = vset.pattern.permute.xlu0 0
        %382 = vperm.xlu0 %381, %v376
        %v383 = vpop.permute.xlu0 %382
        %v384 = vlaneseq
        %v385 = vshrl.u32 %v384, 7
        %v386 = vsub.s32 0, %v385
        %v387 = vrot.slane %v377, %v386
        %vm388 = vcmp.eq.s32.totalorder %v380, %v387
        %vm389 = vcmp.eq.s32.totalorder %v383, %v387
        %v390 = vsel %vm388, 1, 0
        %v391 = vsel %vm389, 1, 0
        %v392 = vcvt.s32.f32 %v390
        %v393 = vcvt.s32.f32 %v391
        %v394 = vld [vmem:[%s4] sm:$0xf]
        %vm395 = vcmask 31744
        %v397 = vsel %vm395, %v392, 0
        %v400 = vsel %vm395, %v393, 0
        %vm402 = vcmask 1043456
        %v404 = vsel %vm402, %v394, 0
        %406 = vmatprep.subr.mxu0 0.0
        %407 = vmatpush1.msra.mxu0 %v404
        %408 = vmatprep.subr.mxu0 0.0
        %409 = vmatpush1.msra.mxu0 0.0
        %410 = vmatprep.subr.mxu0 0.0
        %411 = vmatpush1.msra.mxu0 0.0
        %412 = vmatprep.subr.mxu0 0.0
        %413 = vmatpush1.msra.mxu0 0.0
        %414 = vmatprep.subr.mxu0 0.0
        %415 = vmatpush1.msra.mxu0 0.0
        %416 = vmatprep.subr.mxu0 0.0
        %417 = vmatpush1.msra.mxu0 0.0
        %418 = vmatprep.subr.mxu0 0.0
        %419 = vmatpush1.msra.mxu0 0.0
        %420 = vmatprep.subr.mxu0 0.0
        %421 = vmatpush1.msra.mxu0 0.0
        %422 = vmatprep.subr.mxu0 0.0
        %423 = vmatpush1.msra.mxu0 0.0
        %424 = vmatprep.subr.mxu0 0.0
        %425 = vmatpush1.msra.mxu0 0.0
        %426 = vmatprep.subr.mxu0 0.0
        %427 = vmatpush1.msra.mxu0 0.0
        %428 = vmatprep.subr.mxu0 0.0
        %429 = vmatpush1.msra.mxu0 0.0
        %430 = vmatprep.subr.mxu0 0.0
        %431 = vmatpush1.msra.mxu0 0.0
        %432 = vmatprep.subr.mxu0 0.0
        %433 = vmatpush1.msra.mxu0 0.0
        %434 = vmatprep.subr.mxu0 0.0
        %435 = vmatpush1.msra.mxu0 0.0
        %436 = vmatprep.subr.mxu0 0.0
        %437 = vmatpush1.msra.mxu0 0.0
        %438 = vmatprep.subr.mxu0 0.0
        %439 = vmatpush1.msra.mxu0 0.0
        %440 = vmatprep.subr.mxu0 0.0
        %441 = vmatpush1.msra.mxu0 0.0
        %442 = vmatprep.subr.mxu0 0.0
        %443 = vmatpush1.msra.mxu0 0.0
        %444 = vmatprep.subr.mxu0 0.0
        %445 = vmatpush1.msra.mxu0 0.0
        %446 = vmatprep.subr.mxu0 0.0
        %447 = vmatpush1.msra.mxu0 0.0
        %448 = vmatprep.subr.mxu0 0.0
        %449 = vmatpush1.msra.mxu0 0.0
        %450 = vmatprep.subr.mxu0 0.0
        %451 = vmatpush1.msra.mxu0 0.0
        %452 = vmatprep.subr.mxu0 0.0
        %453 = vmatpush1.msra.mxu0 0.0
        %454 = vmatprep.subr.mxu0 0.0
        %455 = vmatpush1.msra.mxu0 0.0
        %456 = vmatprep.subr.mxu0 0.0
        %457 = vmatpush1.msra.mxu0 0.0
        %458 = vmatprep.subr.mxu0 0.0
        %459 = vmatpush1.msra.mxu0 0.0
        %460 = vmatprep.subr.mxu0 0.0
        %461 = vmatpush1.msra.mxu0 0.0
        %462 = vmatprep.subr.mxu0 0.0
        %463 = vmatpush1.msra.mxu0 0.0
        %464 = vmatprep.subr.mxu0 0.0
        %465 = vmatpush1.msra.mxu0 0.0
        %466 = vmatprep.subr.mxu0 0.0
        %467 = vmatpush1.msra.mxu0 0.0
        %468 = vmatprep.subr.mxu0 0.0
        %469 = vmatpush1.msra.mxu0 0.0
        %470 = vmatprep.mubr.f32.mxu0 0.0
        %471 = vmatmul.mubr.f32.gmra.mrb[0].mxu0 %v397
        %v472 = vpop.f32.mrb[0].mxu0
        %v473 = vadd.f32 0.0, %v472
        %v474 = vpop.f32.mrb[0].mxu0
        %475 = vmatprep.mubr.f32.mxu0 0.0
        %476 = vmatmul.mubr.f32.gmra.mrb[0].mxu0 %v400
        %v477 = vpop.f32.mrb[0].mxu0
        %v478 = vadd.f32 0.0, %v477
        %v479 = vpop.f32.mrb[0].mxu0
        %480 = vdwg.mxu0
        %v481 = vsub.f32 %v367, %v473
        %v482 = vsub.f32 %v372, %v478
        %v483 = vmul.f32 %v481, %v481
        %v484 = vmul.f32 %v482, %v482
        %vm485 = vcmask 130048
        %v486 = vsel %vm485, %v483, 0.0
        %487 = vadd.xlane.f32.xlu0 %v486
        %v488 = vpop.xlane.xlu0 %487
        %v489 = vsel %vm485, %v484, 0.0
        %490 = vadd.xlane.f32.xlu0 %v489
        %v491 = vpop.xlane.xlu0 %490
        %s492 = smul.u32 %s19, 16
        %v493 = vlaneseq
        %v494 = vshrl.u32 %v493, 7
        %v495 = vadd.s32 %v494, 8
        %v496 = vstv %s492
        %v497 = vadd.s32 %v496, %v494
        %v498 = vadd.s32 %v496, %v495
        %vm499 = vcmp.lt.s32.totalorder %v497, 20
        %vm500 = vcmp.lt.s32.totalorder %v498, 20
        %v501 = vsel %vm499, %v488, 0.0
        %v502 = vsel %vm500, %v491, 0.0
        %v503 = vadd.f32 %v501, %v502
        %v504 = vrot.slane %v503, 4
        %v505 = vadd.f32 %v503, %v504
        %v506 = vrot.slane %v505, 2
        %v507 = vadd.f32 %v505, %v506
        %v508 = vrot.slane %v507, 1
        %v509 = vadd.f32 %v507, %v508
        %510 = vst [vmem:[%s258] sm:$0xff] %v509
        %s511 = sand.u32 %s142, 1
        %s512 = scalar_lea.sflag [#allocation3], %s511
        %s513 = sand.u32 %s142, 1
        %s514 = smul.addr %s513, 8
        %s515 = scalar_lea.vmem [#allocation2], %s514
        // Predicated region
        $region41: #{tpu_custom_call.1} parent=39 // pred_check
          %p516 = pneg %p152
        $region42: #{tpu_custom_call.1} parent=39 // pred_check_branch
          %518 = sbr.rel (%p516) target = $region44
        $region43: #{tpu_custom_call.1} parent=39 // pred_region
          %s520 = ssub.s32 128, 128
          %521 = vsyncadd %s512, %s520
          %s522 = smul.addr %s19, 128
          %s523 = scalar_lea.hbm %s5, %s522
          %s525 = sshll.u32 %s515, 4
          %s526 = int_to_ptr.vmem [resolvable:$true] %s525
          %528 = dma.vmem_to_hbm [thread:$0]  %s526, 128, %s523, %s512
        $region44: #{tpu_custom_call.1} parent=39 // pred_fallthru
          _
      $region40: #{tpu_custom_call.1} parent=5 // pred_fallthru
        _
      %p529 = scmp.le.s32.totalorder 2, %s14
      // Predicated region
      $region45: #{tpu_custom_call.1} parent=5 // pred_check
        %p530 = pneg %p529
      $region46: #{tpu_custom_call.1} parent=5 // pred_check_branch
        %532 = sbr.rel (%p530) target = $region48
      $region47: #{tpu_custom_call.1} parent=5 // pred_region
        %s533 = ssub.s32 %s14, 2
        // Predicated region
        $region49: #{tpu_custom_call.1} parent=47 // pred_check
          %p534 = pneg %p158
        $region50: #{tpu_custom_call.1} parent=47 // pred_check_branch
          %536 = sbr.rel (%p534) target = $region52
        $region51: #{tpu_custom_call.1} parent=47 // pred_region
          %s537 = sand.u32 %s143, 1
          %s538 = scalar_lea.sflag [#allocation3], %s537
          %s539 = sand.u32 %s143, 1
          %s540 = smul.addr %s539, 8
          %s541 = scalar_lea.vmem [#allocation2], %s540
          %542 = dma.done %s538, 128
        $region52: #{tpu_custom_call.1} parent=47 // pred_fallthru
          _
      $region48: #{tpu_custom_call.1} parent=5 // pred_fallthru
        _
    $region6: #{tpu_custom_call.1} parent=1 // loop_footer
      %s18 = sadd.s32 1, %s14
    $region7: #{tpu_custom_call.1} parent=1 // loop_footer_branch
      %13 = sbr.rel target = $region3
    $region8: #{tpu_custom_call.1} parent=1 // loop_exit
      _
    %543 = vsyncpa [#allocation3], 1
    %s544 = scalar_lea.sflag [#allocation3], 1
    %545 = vsyncpa %s544, 1

</llo_original>
